<compile_context>
chip_gen: v6e
topology: v6e:2x2x1
jax: 0.10.0
libtpu: 0.0.40
codegen_flags: <defaults>
</compile_context>

<pallas_src>
import functools

import jax
import jax.numpy as jnp
from jax import lax
from jax.experimental import pallas as pl
from jax.experimental.pallas import tpu as pltpu


def _triplet_kernel(emb_ref, lab_ref, stats_ref, *, margin: float):
    e = emb_ref[...].astype(jnp.float32)          # (B, D); cast in-kernel
    lab_c = lab_ref[...]                          # (B, 1) int32
    B, D = e.shape
    inv_b = 1.0 / float(B)

    # Gram matrix on the MXU: dot[i, j] = <e_i, e_j>
    dot = lax.dot_general(e, e, (((1,), (1,)), ((), ())),
                          preferred_element_type=jnp.float32)        # (B, B)

    # Squared norms straight from the embeddings.
    e2 = e * e                                                        # (B, D)
    sq_col = jnp.sum(e2, axis=1, keepdims=True)                       # (B, 1)
    ones_row = jnp.ones((1, D), jnp.float32)
    # (1, B) orientation via a tiny matvec on the otherwise-idle MXU
    # (avoids any in-kernel transpose / relayout).
    sq_row = lax.dot_general(ones_row, e2, (((1,), (1,)), ((), ())),
                             preferred_element_type=jnp.float32)      # (1, B)

    # Rebuild the row-oriented labels from the single (B, 1) input with a
    # K=1 MXU matmul: lab_rows[i, j] = lab[j].  Exact for integer labels.
    ones_col = jnp.ones((B, 1), jnp.float32)
    lab_rows_f = lax.dot_general(ones_col, lab_c.astype(jnp.float32),
                                 (((1,), (1,)), ((), ())),
                                 preferred_element_type=jnp.float32)  # (B, B)
    same = lab_c == lab_rows_f.astype(jnp.int32)                      # (B, B) bool

    row_ids = lax.broadcasted_iota(jnp.int32, (B, B), 0)
    col_ids = lax.broadcasted_iota(jnp.int32, (B, B), 1)
    offdiag = row_ids != col_ids                                      # (B, B) bool

    # Mine in shifted squared-distance space: m[i,j] = |e_j|^2 - 2<e_i,e_j>.
    # sq_col_i is constant along j, so it cannot change which j is selected.
    m = sq_row - 2.0 * dot                                            # (B, B)

    pos_m = jnp.where(same & offdiag, m, -jnp.inf)
    neg_m = jnp.where(same, jnp.float32(1e12), m)   # 1e12 in d2 ≈ 1e6 distance
    max_pos_m = jnp.max(pos_m, axis=1, keepdims=True)                 # (B, 1)
    min_neg_m = jnp.min(neg_m, axis=1, keepdims=True)                 # (B, 1)

    # Clamp / eps / sqrt only on the selected (B,1) vectors.
    hardest_pos = jnp.sqrt(jnp.maximum(max_pos_m + sq_col, 0.0) + 1e-12)
    hardest_neg = jnp.sqrt(jnp.maximum(min_neg_m + sq_col, 0.0) + 1e-12)

    tl = jnp.maximum(hardest_pos - hardest_neg + margin, 0.0)         # (B, 1)

    loss_v = jnp.sum(tl, axis=(0, 1), keepdims=True) * inv_b                 # (1,1)
    # NOTE: active_triplets is a fraction (count / B), matching the module.
    active_v = jnp.sum((tl > 0.0).astype(jnp.float32),
                       axis=(0, 1), keepdims=True) * inv_b                   # (1,1)
    avg_p_v = jnp.sum(hardest_pos, axis=(0, 1), keepdims=True) * inv_b       # (1,1)
    avg_n_v = jnp.sum(hardest_neg, axis=(0, 1), keepdims=True) * inv_b       # (1,1)

    # Pack the four stats into one lane-dense (1, 128) output: lanes 0..3.
    lane = lax.broadcasted_iota(jnp.int32, (1, 128), 1)
    out = jnp.where(lane == 0, loss_v, 0.0)
    out = jnp.where(lane == 1, active_v, out)
    out = jnp.where(lane == 2, avg_p_v, out)
    out = jnp.where(lane == 3, avg_n_v, out)
    stats_ref[...] = out


def triplet_loss_hard(embeddings: jax.Array, labels: jax.Array,
                      margin: float = 0.3):
    """Pallas equivalent of TripletLoss(margin, mining='hard', metric='euclidean')."""
    B, D = embeddings.shape
    if B < 2:
        return jnp.asarray(0.0, jnp.float32), {}

    lab_col = labels.astype(jnp.int32).reshape(B, 1)

    kernel = functools.partial(_triplet_kernel, margin=float(margin))
    stats_vec = pl.pallas_call(
        kernel,
        # Gridless: whole arrays bound directly in VMEM, no pipeline machinery.
        in_specs=[
            pl.BlockSpec(memory_space=pltpu.MemorySpace.VMEM),
            pl.BlockSpec(memory_space=pltpu.MemorySpace.VMEM),
        ],
        out_specs=pl.BlockSpec(memory_space=pltpu.MemorySpace.VMEM),
        out_shape=jax.ShapeDtypeStruct((1, 128), jnp.float32),
    )(embeddings, lab_col)   # native dtype; kernel casts internally

    loss = stats_vec[0, 0]
    stats = {
        "triplet_loss": loss,
        "active_triplets": stats_vec[0, 1],
        "avg_positive_dist": stats_vec[0, 2],
        "avg_negative_dist": stats_vec[0, 3],
    }
    return loss, stats


def _reference_triplet(e, lab, margin=0.3):
    """Pure-JAX reference mirroring the PyTorch module (hard mining, euclidean)."""
    e = e.astype(jnp.float32)
    B = e.shape[0]
    dot = e @ e.T
    sq = jnp.diag(dot)
    d2 = sq[None, :] - 2.0 * dot + sq[:, None]
    d = jnp.sqrt(jnp.maximum(d2, 0.0) + 1e-12)
    pos = (lab[:, None] == lab[None, :]).astype(jnp.float32) - jnp.eye(B)
    neg = (lab[:, None] != lab[None, :]).astype(jnp.float32)
    hp = (d * pos).max(axis=1)
    hn = (d + 1e6 * (1.0 - neg)).min(axis=1)
    tl = jnp.maximum(hp - hn + margin, 0.0)
    return (tl.mean(), (tl > 0).sum() / B, hp.mean(), hn.mean())


if __name__ == "__main__":
    key = jax.random.PRNGKey(0)
    B, D = 8, 32  # batch_size=8, embedding_dim=32
    embeddings = jax.random.normal(key, (B, D), dtype=jnp.float32)
    labels = jnp.array([0, 1, 0, 1, 1, 0, 1, 0], dtype=jnp.int32)  # binary labels

    loss, stats = triplet_loss_hard(embeddings, labels, margin=0.3)
    jax.block_until_ready(loss)

    ref_loss, ref_active, ref_hp, ref_hn = _reference_triplet(
        embeddings, labels, margin=0.3)
    assert jnp.allclose(loss, ref_loss, rtol=1e-4, atol=1e-4)
    assert jnp.allclose(stats["active_triplets"], ref_active, rtol=1e-4, atol=1e-4)
    assert jnp.allclose(stats["avg_positive_dist"], ref_hp, rtol=1e-4, atol=1e-4)
    assert jnp.allclose(stats["avg_negative_dist"], ref_hn, rtol=1e-4, atol=1e-4)

    print("KERNEL_OK")
</pallas_src>

<mosaic_0001>
module attributes {stable_mosaic.version = 11 : i64} {
  func.func @_triplet_kernel(%arg0: memref<8x32xf32, #tpu.memory_space<vmem>>, %arg1: memref<8x1xi32, #tpu.memory_space<vmem>>, %arg2: memref<1x128xf32, #tpu.memory_space<vmem>>) attributes {dimension_semantics = [], scalar_prefetch = 0 : i64, scratch_operands = 0 : i64, tpu.core_type = #tpu.core_type<tc>} {
    %c0 = arith.constant 0 : index
    %c0_0 = arith.constant 0 : index
    %0 = vector.load %arg0[%c0, %c0_0] : memref<8x32xf32, #tpu.memory_space<vmem>>, vector<8x32xf32>
    %c0_1 = arith.constant 0 : index
    %c0_2 = arith.constant 0 : index
    %1 = vector.load %arg1[%c0_1, %c0_2] : memref<8x1xi32, #tpu.memory_space<vmem>>, vector<8x1xi32>
    %cst = arith.constant dense<0.000000e+00> : vector<8x8xf32>
    %2 = tpu.matmul %0, %0, %cst {dimension_numbers = #tpu.dot_dimension_numbers<[1], [1], [0], [0], [0, 0, 1, 0], [], []>} : vector<8x32xf32>, vector<8x32xf32>, vector<8x8xf32> -> vector<8x8xf32>
    %3 = arith.mulf %0, %0 : vector<8x32xf32>
    %cst_3 = arith.constant dense<0.000000e+00> : vector<8xf32>
    %4 = vector.multi_reduction <add>, %3, %cst_3 [1] : vector<8x32xf32> to vector<8xf32>
    %5 = vector.shape_cast %4 : vector<8xf32> to vector<8x1xf32>
    %cst_4 = arith.constant 1.000000e+00 : f32
    %6 = vector.broadcast %cst_4 : f32 to vector<1x32xf32>
    %cst_5 = arith.constant dense<0.000000e+00> : vector<1x8xf32>
    %7 = tpu.matmul %6, %3, %cst_5 {dimension_numbers = #tpu.dot_dimension_numbers<[1], [1], [0], [0], [0, 0, 1, 0], [], []>} : vector<1x32xf32>, vector<8x32xf32>, vector<1x8xf32> -> vector<1x8xf32>
    %cst_6 = arith.constant 1.000000e+00 : f32
    %8 = vector.broadcast %cst_6 : f32 to vector<8x1xf32>
    %9 = arith.sitofp %1 : vector<8x1xi32> to vector<8x1xf32>
    %cst_7 = arith.constant dense<0.000000e+00> : vector<8x8xf32>
    %10 = tpu.matmul %8, %9, %cst_7 {dimension_numbers = #tpu.dot_dimension_numbers<[1], [1], [0], [0], [0, 0, 1, 0], [], []>} : vector<8x1xf32>, vector<8x1xf32>, vector<8x8xf32> -> vector<8x8xf32>
    %11 = arith.fptosi %10 : vector<8x8xf32> to vector<8x8xi32>
    %12 = vector.broadcast %1 : vector<8x1xi32> to vector<8x8xi32>
    %13 = arith.cmpi eq, %12, %11 : vector<8x8xi32>
    %14 = tpu.iota {dimensions = array<i32: 0>} : vector<8x8xi32>
    %15 = tpu.iota {dimensions = array<i32: 1>} : vector<8x8xi32>
    %16 = arith.cmpi ne, %14, %15 : vector<8x8xi32>
    %cst_8 = arith.constant 2.000000e+00 : f32
    %17 = vector.broadcast %cst_8 : f32 to vector<8x8xf32>
    %18 = arith.mulf %17, %2 : vector<8x8xf32>
    %19 = vector.broadcast %7 : vector<1x8xf32> to vector<8x8xf32>
    %20 = arith.subf %19, %18 : vector<8x8xf32>
    %21 = arith.andi %13, %16 : vector<8x8xi1>
    %cst_9 = arith.constant 0xFF800000 : f32
    %22 = vector.broadcast %cst_9 : f32 to vector<8x8xf32>
    %23 = arith.select %21, %20, %22 : vector<8x8xi1>, vector<8x8xf32>
    %cst_10 = arith.constant 9.99999995E+11 : f32
    %24 = vector.broadcast %cst_10 : f32 to vector<8x8xf32>
    %25 = arith.select %13, %24, %20 : vector<8x8xi1>, vector<8x8xf32>
    %cst_11 = arith.constant dense<0xFF800000> : vector<8xf32>
    %26 = vector.multi_reduction <maximumf>, %23, %cst_11 [1] : vector<8x8xf32> to vector<8xf32>
    %27 = vector.shape_cast %26 : vector<8xf32> to vector<8x1xf32>
    %cst_12 = arith.constant dense<0x7F800000> : vector<8xf32>
    %28 = vector.multi_reduction <minimumf>, %25, %cst_12 [1] : vector<8x8xf32> to vector<8xf32>
    %29 = vector.shape_cast %28 : vector<8xf32> to vector<8x1xf32>
    %30 = arith.addf %27, %5 : vector<8x1xf32>
    %cst_13 = arith.constant 0.000000e+00 : f32
    %31 = vector.broadcast %cst_13 : f32 to vector<8x1xf32>
    %32 = arith.maximumf %30, %31 : vector<8x1xf32>
    %cst_14 = arith.constant 9.99999996E-13 : f32
    %33 = vector.broadcast %cst_14 : f32 to vector<8x1xf32>
    %34 = arith.addf %32, %33 : vector<8x1xf32>
    %35 = math.sqrt %34 : vector<8x1xf32>
    %36 = arith.addf %29, %5 : vector<8x1xf32>
    %cst_15 = arith.constant 0.000000e+00 : f32
    %37 = vector.broadcast %cst_15 : f32 to vector<8x1xf32>
    %38 = arith.maximumf %36, %37 : vector<8x1xf32>
    %cst_16 = arith.constant 9.99999996E-13 : f32
    %39 = vector.broadcast %cst_16 : f32 to vector<8x1xf32>
    %40 = arith.addf %38, %39 : vector<8x1xf32>
    %41 = math.sqrt %40 : vector<8x1xf32>
    %42 = arith.subf %35, %41 : vector<8x1xf32>
    %cst_17 = arith.constant 3.000000e-01 : f32
    %43 = vector.broadcast %cst_17 : f32 to vector<8x1xf32>
    %44 = arith.addf %42, %43 : vector<8x1xf32>
    %cst_18 = arith.constant 0.000000e+00 : f32
    %45 = vector.broadcast %cst_18 : f32 to vector<8x1xf32>
    %46 = arith.maximumf %44, %45 : vector<8x1xf32>
    %47 = vector.shape_cast %46 : vector<8x1xf32> to vector<1x8x1xf32>
    %cst_19 = arith.constant dense<0.000000e+00> : vector<1xf32>
    %48 = vector.multi_reduction <add>, %47, %cst_19 [1, 2] : vector<1x8x1xf32> to vector<1xf32>
    %49 = vector.shape_cast %48 : vector<1xf32> to vector<1x1x1xf32>
    %50 = vector.extract %49[0, 0, 0] : f32 from vector<1x1x1xf32>
    %51 = vector.broadcast %50 : f32 to vector<1x1xf32>
    %cst_20 = arith.constant 1.250000e-01 : f32
    %52 = vector.broadcast %cst_20 : f32 to vector<1x1xf32>
    %53 = arith.mulf %51, %52 : vector<1x1xf32>
    %cst_21 = arith.constant 0.000000e+00 : f32
    %54 = vector.broadcast %cst_21 : f32 to vector<8x1xf32>
    %55 = arith.cmpf ogt, %46, %54 : vector<8x1xf32>
    %56 = arith.extui %55 : vector<8x1xi1> to vector<8x1xi32>
    %57 = arith.sitofp %56 : vector<8x1xi32> to vector<8x1xf32>
    %58 = vector.shape_cast %57 : vector<8x1xf32> to vector<1x8x1xf32>
    %cst_22 = arith.constant dense<0.000000e+00> : vector<1xf32>
    %59 = vector.multi_reduction <add>, %58, %cst_22 [1, 2] : vector<1x8x1xf32> to vector<1xf32>
    %60 = vector.shape_cast %59 : vector<1xf32> to vector<1x1x1xf32>
    %61 = vector.extract %60[0, 0, 0] : f32 from vector<1x1x1xf32>
    %62 = vector.broadcast %61 : f32 to vector<1x1xf32>
    %cst_23 = arith.constant 1.250000e-01 : f32
    %63 = vector.broadcast %cst_23 : f32 to vector<1x1xf32>
    %64 = arith.mulf %62, %63 : vector<1x1xf32>
    %65 = vector.shape_cast %35 : vector<8x1xf32> to vector<1x8x1xf32>
    %cst_24 = arith.constant dense<0.000000e+00> : vector<1xf32>
    %66 = vector.multi_reduction <add>, %65, %cst_24 [1, 2] : vector<1x8x1xf32> to vector<1xf32>
    %67 = vector.shape_cast %66 : vector<1xf32> to vector<1x1x1xf32>
    %68 = vector.extract %67[0, 0, 0] : f32 from vector<1x1x1xf32>
    %69 = vector.broadcast %68 : f32 to vector<1x1xf32>
    %cst_25 = arith.constant 1.250000e-01 : f32
    %70 = vector.broadcast %cst_25 : f32 to vector<1x1xf32>
    %71 = arith.mulf %69, %70 : vector<1x1xf32>
    %72 = vector.shape_cast %41 : vector<8x1xf32> to vector<1x8x1xf32>
    %cst_26 = arith.constant dense<0.000000e+00> : vector<1xf32>
    %73 = vector.multi_reduction <add>, %72, %cst_26 [1, 2] : vector<1x8x1xf32> to vector<1xf32>
    %74 = vector.shape_cast %73 : vector<1xf32> to vector<1x1x1xf32>
    %75 = vector.extract %74[0, 0, 0] : f32 from vector<1x1x1xf32>
    %76 = vector.broadcast %75 : f32 to vector<1x1xf32>
    %cst_27 = arith.constant 1.250000e-01 : f32
    %77 = vector.broadcast %cst_27 : f32 to vector<1x1xf32>
    %78 = arith.mulf %76, %77 : vector<1x1xf32>
    %79 = tpu.iota {dimensions = array<i32: 1>} : vector<1x128xi32>
    %c0_i32 = arith.constant 0 : i32
    %80 = vector.broadcast %c0_i32 : i32 to vector<1x128xi32>
    %81 = arith.cmpi eq, %79, %80 : vector<1x128xi32>
    %cst_28 = arith.constant 0.000000e+00 : f32
    %82 = vector.shape_cast %53 : vector<1x1xf32> to vector<1x1xf32>
    %83 = vector.broadcast %82 : vector<1x1xf32> to vector<1x128xf32>
    %84 = vector.broadcast %cst_28 : f32 to vector<1x128xf32>
    %85 = arith.select %81, %83, %84 : vector<1x128xi1>, vector<1x128xf32>
    %c1_i32 = arith.constant 1 : i32
    %86 = vector.broadcast %c1_i32 : i32 to vector<1x128xi32>
    %87 = arith.cmpi eq, %79, %86 : vector<1x128xi32>
    %88 = vector.shape_cast %64 : vector<1x1xf32> to vector<1x1xf32>
    %89 = vector.broadcast %88 : vector<1x1xf32> to vector<1x128xf32>
    %90 = arith.select %87, %89, %85 : vector<1x128xi1>, vector<1x128xf32>
    %c2_i32 = arith.constant 2 : i32
    %91 = vector.broadcast %c2_i32 : i32 to vector<1x128xi32>
    %92 = arith.cmpi eq, %79, %91 : vector<1x128xi32>
    %93 = vector.shape_cast %71 : vector<1x1xf32> to vector<1x1xf32>
    %94 = vector.broadcast %93 : vector<1x1xf32> to vector<1x128xf32>
    %95 = arith.select %92, %94, %90 : vector<1x128xi1>, vector<1x128xf32>
    %c3_i32 = arith.constant 3 : i32
    %96 = vector.broadcast %c3_i32 : i32 to vector<1x128xi32>
    %97 = arith.cmpi eq, %79, %96 : vector<1x128xi32>
    %98 = vector.shape_cast %78 : vector<1x1xf32> to vector<1x1xf32>
    %99 = vector.broadcast %98 : vector<1x1xf32> to vector<1x128xf32>
    %100 = arith.select %97, %99, %95 : vector<1x128xi1>, vector<1x128xf32>
    %c0_29 = arith.constant 0 : index
    %c0_30 = arith.constant 0 : index
    %101 = vector.load %arg2[%c0_29, %c0_30] : memref<1x128xf32, #tpu.memory_space<vmem>>, vector<1x128xf32>
    tpu.vector_store %arg2[%c0_29, %c0_30], %100 {strides = array<i32>} : memref<1x128xf32, #tpu.memory_space<vmem>>, vector<1x128xf32>,
    return
  }
}

</mosaic_0001>

<llo_original>
// kernel: tpu_custom_call.1
$region0: #{tpu_custom_call.1}
  #allocation0 [shape = 'u32[]', space=smem, size = 0x4, offset = 0x4, fixed_abs, tag = 'smem constant byte address 0x4 - core index']
  #allocation1 [shape = 'u32[144,128]{1,0:T(1,128)}', space=vmem, size = 0x12000, scoped, tag = 'internal scratch']
  %s0 = inlined_call_operand.vmem [shape: f32[8,32], index: 0, kind: input, shape index: {}]
  %s1 = inlined_call_operand.vmem [shape: s32[8,1], index: 1, kind: input, shape index: {}]
  %s2 = inlined_call_operand.hbm [shape: f32[1,128], index: 2, kind: output, shape index: {}]
  %s3 = sld [smem:[#allocation0]]
  $region18: #{tpu_custom_call.1} parent=0
    _
  %s5 = ssub.s32 1, %s3
  %s6 = scalar_select 0, %s5, %s3
  $region1: #{tpu_custom_call.1} parent=0
    #allocation2 [shape = 'u8[512]{0}', space=vmem, size = 0x400, scoped, tag = 'output window, operand 0, single buffered']
    #allocation3 [shape = 's32[1]{0}', space=sflag, size = 0x4, scoped, tag = 'scoped memory for tpu_custom_call.1']
    %7 = vsyncpa [#allocation3], 0
    // Predicated region
    $region2: #{tpu_custom_call.1} parent=1 // pred_check
      _
    $region3: #{tpu_custom_call.1} parent=1 // pred_check_branch
      %9 = sbr.rel (0) target = $region5
    $region4: #{tpu_custom_call.1} parent=1 // pred_region
      _
    $region5: #{tpu_custom_call.1} parent=1 // pred_fallthru
      _
    // Predicated region
    $region6: #{tpu_custom_call.1} parent=1 // pred_check
      _
    $region7: #{tpu_custom_call.1} parent=1 // pred_check_branch
      %11 = sbr.rel (0) target = $region9
    $region8: #{tpu_custom_call.1} parent=1 // pred_region
      _
    $region9: #{tpu_custom_call.1} parent=1 // pred_fallthru
      _
    %v12 = vld [vmem:[%s0] sm:$0xff]
    %v13 = vld [vmem:[%s1] sm:$0xff]
    %vm14 = vcmask 261120
    %v16 = vsel %vm14, %v12, 0
    %18 = vmatprep.subr.mxu0 0.0
    %19 = vmatpush1.xpose.msra.mxu0 0.0
    %20 = vmatprep.subr.mxu0 0.0
    %21 = vmatpush1.xpose.msra.mxu0 0.0
    %22 = vmatprep.subr.mxu0 0.0
    %23 = vmatpush1.xpose.msra.mxu0 0.0
    %24 = vmatprep.subr.mxu0 0.0
    %25 = vmatpush1.xpose.msra.mxu0 0.0
    %26 = vmatprep.subr.mxu0 0.0
    %27 = vmatpush1.xpose.msra.mxu0 0.0
    %28 = vmatprep.subr.mxu0 0.0
    %29 = vmatpush1.xpose.msra.mxu0 0.0
    %30 = vmatprep.subr.mxu0 0.0
    %31 = vmatpush1.xpose.msra.mxu0 0.0
    %32 = vmatprep.subr.mxu0 0.0
    %33 = vmatpush1.xpose.msra.mxu0 0.0
    %34 = vmatprep.subr.mxu0 0.0
    %35 = vmatpush1.xpose.msra.mxu0 0.0
    %36 = vmatprep.subr.mxu0 0.0
    %37 = vmatpush1.xpose.msra.mxu0 0.0
    %38 = vmatprep.subr.mxu0 0.0
    %39 = vmatpush1.xpose.msra.mxu0 0.0
    %40 = vmatprep.subr.mxu0 0.0
    %41 = vmatpush1.xpose.msra.mxu0 0.0
    %42 = vmatprep.subr.mxu0 0.0
    %43 = vmatpush1.xpose.msra.mxu0 0.0
    %44 = vmatprep.subr.mxu0 0.0
    %45 = vmatpush1.xpose.msra.mxu0 0.0
    %46 = vmatprep.subr.mxu0 0.0
    %47 = vmatpush1.xpose.msra.mxu0 0.0
    %48 = vmatprep.subr.mxu0 0.0
    %49 = vmatpush1.xpose.msra.mxu0 %v16
    %50 = vmatprep.subr.mxu0 0.0
    %51 = vmatpush2.xpose.msra.mxu0 0.0
    %52 = vmatprep.subr.mxu0 0.0
    %53 = vmatpush2.xpose.msra.mxu0 0.0
    %54 = vmatprep.subr.mxu0 0.0
    %55 = vmatpush2.xpose.msra.mxu0 0.0
    %56 = vmatprep.subr.mxu0 0.0
    %57 = vmatpush2.xpose.msra.mxu0 0.0
    %58 = vmatprep.subr.mxu0 0.0
    %59 = vmatpush2.xpose.msra.mxu0 0.0
    %60 = vmatprep.subr.mxu0 0.0
    %61 = vmatpush2.xpose.msra.mxu0 0.0
    %62 = vmatprep.subr.mxu0 0.0
    %63 = vmatpush2.xpose.msra.mxu0 0.0
    %64 = vmatprep.subr.mxu0 0.0
    %65 = vmatpush2.xpose.msra.mxu0 0.0
    %66 = vmatprep.subr.mxu0 0.0
    %67 = vmatpush2.xpose.msra.mxu0 0.0
    %68 = vmatprep.subr.mxu0 0.0
    %69 = vmatpush2.xpose.msra.mxu0 0.0
    %70 = vmatprep.subr.mxu0 0.0
    %71 = vmatpush2.xpose.msra.mxu0 0.0
    %72 = vmatprep.subr.mxu0 0.0
    %73 = vmatpush2.xpose.msra.mxu0 0.0
    %74 = vmatprep.subr.mxu0 0.0
    %75 = vmatpush2.xpose.msra.mxu0 0.0
    %76 = vmatprep.subr.mxu0 0.0
    %77 = vmatpush2.xpose.msra.mxu0 0.0
    %78 = vmatprep.subr.mxu0 0.0
    %79 = vmatpush2.xpose.msra.mxu0 0.0
    %80 = vmatprep.subr.mxu0 0.0
    %81 = vmatpush2.xpose.msra.mxu0 0.0
    %82 = vmatprep.mubr.f32.mxu0 0.0
    %83 = vmatmul.mubr.f32.gmra.mxu0 %v16
    %v84 = vpop.f32.mrf.mxu0
    %v85 = vadd.f32 0.0, %v84
    %v86 = vpop.f32.mrf.mxu0
    %87 = vdwg.mxu0
    %v88 = vmul.f32 %v12, %v12
    %v89 = vsel %vm14, %v88, 0.0
    %90 = vadd.xlane.f32.xlu0 %v89
    %v91 = vpop.xlane.xlu0 %90
    %v93 = vsel %vm14, 1.0, 0
    %v96 = vsel %vm14, %v88, 0
    %98 = vmatprep.subr.mxu0 0.0
    %99 = vmatpush1.xpose.msra.mxu0 0.0
    %100 = vmatprep.subr.mxu0 0.0
    %101 = vmatpush1.xpose.msra.mxu0 0.0
    %102 = vmatprep.subr.mxu0 0.0
    %103 = vmatpush1.xpose.msra.mxu0 0.0
    %104 = vmatprep.subr.mxu0 0.0
    %105 = vmatpush1.xpose.msra.mxu0 0.0
    %106 = vmatprep.subr.mxu0 0.0
    %107 = vmatpush1.xpose.msra.mxu0 0.0
    %108 = vmatprep.subr.mxu0 0.0
    %109 = vmatpush1.xpose.msra.mxu0 0.0
    %110 = vmatprep.subr.mxu0 0.0
    %111 = vmatpush1.xpose.msra.mxu0 0.0
    %112 = vmatprep.subr.mxu0 0.0
    %113 = vmatpush1.xpose.msra.mxu0 0.0
    %114 = vmatprep.subr.mxu0 0.0
    %115 = vmatpush1.xpose.msra.mxu0 0.0
    %116 = vmatprep.subr.mxu0 0.0
    %117 = vmatpush1.xpose.msra.mxu0 0.0
    %118 = vmatprep.subr.mxu0 0.0
    %119 = vmatpush1.xpose.msra.mxu0 0.0
    %120 = vmatprep.subr.mxu0 0.0
    %121 = vmatpush1.xpose.msra.mxu0 0.0
    %122 = vmatprep.subr.mxu0 0.0
    %123 = vmatpush1.xpose.msra.mxu0 0.0
    %124 = vmatprep.subr.mxu0 0.0
    %125 = vmatpush1.xpose.msra.mxu0 0.0
    %126 = vmatprep.subr.mxu0 0.0
    %127 = vmatpush1.xpose.msra.mxu0 0.0
    %128 = vmatprep.subr.mxu0 0.0
    %129 = vmatpush1.xpose.msra.mxu0 %v96
    %130 = vmatprep.subr.mxu0 0.0
    %131 = vmatpush2.xpose.msra.mxu0 0.0
    %132 = vmatprep.subr.mxu0 0.0
    %133 = vmatpush2.xpose.msra.mxu0 0.0
    %134 = vmatprep.subr.mxu0 0.0
    %135 = vmatpush2.xpose.msra.mxu0 0.0
    %136 = vmatprep.subr.mxu0 0.0
    %137 = vmatpush2.xpose.msra.mxu0 0.0
    %138 = vmatprep.subr.mxu0 0.0
    %139 = vmatpush2.xpose.msra.mxu0 0.0
    %140 = vmatprep.subr.mxu0 0.0
    %141 = vmatpush2.xpose.msra.mxu0 0.0
    %142 = vmatprep.subr.mxu0 0.0
    %143 = vmatpush2.xpose.msra.mxu0 0.0
    %144 = vmatprep.subr.mxu0 0.0
    %145 = vmatpush2.xpose.msra.mxu0 0.0
    %146 = vmatprep.subr.mxu0 0.0
    %147 = vmatpush2.xpose.msra.mxu0 0.0
    %148 = vmatprep.subr.mxu0 0.0
    %149 = vmatpush2.xpose.msra.mxu0 0.0
    %150 = vmatprep.subr.mxu0 0.0
    %151 = vmatpush2.xpose.msra.mxu0 0.0
    %152 = vmatprep.subr.mxu0 0.0
    %153 = vmatpush2.xpose.msra.mxu0 0.0
    %154 = vmatprep.subr.mxu0 0.0
    %155 = vmatpush2.xpose.msra.mxu0 0.0
    %156 = vmatprep.subr.mxu0 0.0
    %157 = vmatpush2.xpose.msra.mxu0 0.0
    %158 = vmatprep.subr.mxu0 0.0
    %159 = vmatpush2.xpose.msra.mxu0 0.0
    %160 = vmatprep.subr.mxu0 0.0
    %161 = vmatpush2.xpose.msra.mxu0 0.0
    %162 = vmatprep.mubr.f32.mxu0 0.0
    %163 = vmatmul.mubr.f32.gmra.mxu0 %v93
    %v164 = vpop.f32.mrf.mxu0
    %v165 = vadd.f32 0.0, %v164
    %v166 = vpop.f32.mrf.mxu0
    %167 = vdwg.mxu0
    %v168 = vcvt.s32.f32 %v13
    %vm169 = vcmask 7168
    %v170 = vsel %vm169, 1.0, 0
    %v173 = vsel %vm169, %v168, 0
    %175 = vmatprep.subr.mxu0 0.0
    %176 = vmatpush1.xpose.msra.mxu0 0.0
    %177 = vmatprep.subr.mxu0 0.0
    %178 = vmatpush1.xpose.msra.mxu0 0.0
    %179 = vmatprep.subr.mxu0 0.0
    %180 = vmatpush1.xpose.msra.mxu0 0.0
    %181 = vmatprep.subr.mxu0 0.0
    %182 = vmatpush1.xpose.msra.mxu0 0.0
    %183 = vmatprep.subr.mxu0 0.0
    %184 = vmatpush1.xpose.msra.mxu0 0.0
    %185 = vmatprep.subr.mxu0 0.0
    %186 = vmatpush1.xpose.msra.mxu0 0.0
    %187 = vmatprep.subr.mxu0 0.0
    %188 = vmatpush1.xpose.msra.mxu0 0.0
    %189 = vmatprep.subr.mxu0 0.0
    %190 = vmatpush1.xpose.msra.mxu0 0.0
    %191 = vmatprep.subr.mxu0 0.0
    %192 = vmatpush1.xpose.msra.mxu0 0.0
    %193 = vmatprep.subr.mxu0 0.0
    %194 = vmatpush1.xpose.msra.mxu0 0.0
    %195 = vmatprep.subr.mxu0 0.0
    %196 = vmatpush1.xpose.msra.mxu0 0.0
    %197 = vmatprep.subr.mxu0 0.0
    %198 = vmatpush1.xpose.msra.mxu0 0.0
    %199 = vmatprep.subr.mxu0 0.0
    %200 = vmatpush1.xpose.msra.mxu0 0.0
    %201 = vmatprep.subr.mxu0 0.0
    %202 = vmatpush1.xpose.msra.mxu0 0.0
    %203 = vmatprep.subr.mxu0 0.0
    %204 = vmatpush1.xpose.msra.mxu0 0.0
    %205 = vmatprep.subr.mxu0 0.0
    %206 = vmatpush1.xpose.msra.mxu0 %v173
    %207 = vmatprep.subr.mxu0 0.0
    %208 = vmatpush2.xpose.msra.mxu0 0.0
    %209 = vmatprep.subr.mxu0 0.0
    %210 = vmatpush2.xpose.msra.mxu0 0.0
    %211 = vmatprep.subr.mxu0 0.0
    %212 = vmatpush2.xpose.msra.mxu0 0.0
    %213 = vmatprep.subr.mxu0 0.0
    %214 = vmatpush2.xpose.msra.mxu0 0.0
    %215 = vmatprep.subr.mxu0 0.0
    %216 = vmatpush2.xpose.msra.mxu0 0.0
    %217 = vmatprep.subr.mxu0 0.0
    %218 = vmatpush2.xpose.msra.mxu0 0.0
    %219 = vmatprep.subr.mxu0 0.0
    %220 = vmatpush2.xpose.msra.mxu0 0.0
    %221 = vmatprep.subr.mxu0 0.0
    %222 = vmatpush2.xpose.msra.mxu0 0.0
    %223 = vmatprep.subr.mxu0 0.0
    %224 = vmatpush2.xpose.msra.mxu0 0.0
    %225 = vmatprep.subr.mxu0 0.0
    %226 = vmatpush2.xpose.msra.mxu0 0.0
    %227 = vmatprep.subr.mxu0 0.0
    %228 = vmatpush2.xpose.msra.mxu0 0.0
    %229 = vmatprep.subr.mxu0 0.0
    %230 = vmatpush2.xpose.msra.mxu0 0.0
    %231 = vmatprep.subr.mxu0 0.0
    %232 = vmatpush2.xpose.msra.mxu0 0.0
    %233 = vmatprep.subr.mxu0 0.0
    %234 = vmatpush2.xpose.msra.mxu0 0.0
    %235 = vmatprep.subr.mxu0 0.0
    %236 = vmatpush2.xpose.msra.mxu0 0.0
    %237 = vmatprep.subr.mxu0 0.0
    %238 = vmatpush2.xpose.msra.mxu0 0.0
    %239 = vmatprep.mubr.f32.mxu0 0.0
    %240 = vmatmul.mubr.f32.gmra.mxu0 %v170
    %v241 = vpop.f32.mrf.mxu0
    %v242 = vadd.f32 0.0, %v241
    %v243 = vpop.f32.mrf.mxu0
    %244 = vdwg.mxu0
    %v245 = vcvt.f32.s32.to.zero.pseudo %v242
    %246 = vset.pattern.permute.xlu0 0
    %247 = vperm.xlu0 %246, %v13
    %v248 = vpop.permute.xlu0 %247
    %vm249 = vcmp.eq.s32.totalorder %v248, %v245
    %v250 = vlaneseq
    %v251 = vshrl.u32 %v250, 7
    %v252 = vlaneseq
    %v253 = vand.u32 %v252, 127
    %vm254 = vcmp.ne.s32.totalorder %v251, %v253
    %v255 = vmul.f32 %v85, 2.0
    %v256 = vlaneseq
    %v257 = vshrl.u32 %v256, 7
    %v258 = vsub.s32 0, %v257
    %v259 = vrot.slane %v165, %v258
    %v260 = vsub.f32 %v259, %v255
    %vm261 = vmand %vm249, %vm254
    %v262 = vsel %vm261, %v260, -inf
    %v263 = vsel %vm249, 1e+12, %v260
    %vm264 = vcmask 64512
    %v265 = vsel %vm264, %v262, -inf
    %266 = vmax.xlane.f32.xlu0 %v265
    %v267 = vpop.xlane.xlu0 %266
    %v268 = vsel %vm264, %v263, inf
    %269 = vmin.xlane.f32.xlu0 %v268
    %v270 = vpop.xlane.xlu0 %269
    %v271 = vadd.f32 %v267, %v91
    %v272 = vmax.f32 %v271, 0.0
    %v273 = vadd.f32 %v272, 1e-12
    %v274 = vrsqrt.pop %v273
    %v275 = vmul.f32 %v273, %v274
    %vm276 = vcmp.eq.f32.partialorder %v273, inf
    %v277 = vsel %vm276, %v273, %v275
    %vm278 = vcmp.eq.f32.partialorder %v273, 0.0
    %v279 = vand.u32 %v273, 2147483648
    %v280 = vsel %vm278, %v279, %v277
    %v281 = vadd.f32 %v270, %v91
    %v282 = vmax.f32 %v281, 0.0
    %v283 = vadd.f32 %v282, 1e-12
    %v284 = vrsqrt.pop %v283
    %v285 = vmul.f32 %v283, %v284
    %vm286 = vcmp.eq.f32.partialorder %v283, inf
    %v287 = vsel %vm286, %v283, %v285
    %vm288 = vcmp.eq.f32.partialorder %v283, 0.0
    %v289 = vand.u32 %v283, 2147483648
    %v290 = vsel %vm288, %v289, %v287
    %v291 = vsub.f32 %v280, %v290
    %v292 = vadd.f32 %v291, 0.3
    %v293 = vmax.f32 %v292, 0.0
    %v294 = vsel %vm169, %v293, 0.0
    %295 = vadd.xlane.f32.xlu0 %v294
    %v296 = vpop.xlane.xlu0 %295
    %v297 = vrot.slane %v296, 4
    %v298 = vadd.f32 %v296, %v297
    %v299 = vrot.slane %v298, 2
    %v300 = vadd.f32 %v298, %v299
    %v301 = vrot.slane %v300, 1
    %v302 = vadd.f32 %v300, %v301
    %s303 = vtos %v302
    %v304 = vstv %s303
    %v305 = vmul.f32 %v304, 0.125
    %vm306 = vcmp.gt.f32.partialorder %v293, 0.0
    %v307 = vsel %vm306, 1, 0
    %v308 = vcvt.s32.f32 %v307
    %v309 = vsel %vm169, %v308, 0.0
    %310 = vadd.xlane.f32.xlu0 %v309
    %v311 = vpop.xlane.xlu0 %310
    %v312 = vrot.slane %v311, 4
    %v313 = vadd.f32 %v311, %v312
    %v314 = vrot.slane %v313, 2
    %v315 = vadd.f32 %v313, %v314
    %v316 = vrot.slane %v315, 1
    %v317 = vadd.f32 %v315, %v316
    %s318 = vtos %v317
    %v319 = vstv %s318
    %v320 = vmul.f32 %v319, 0.125
    %v321 = vsel %vm169, %v280, 0.0
    %322 = vadd.xlane.f32.xlu0 %v321
    %v323 = vpop.xlane.xlu0 %322
    %v324 = vrot.slane %v323, 4
    %v325 = vadd.f32 %v323, %v324
    %v326 = vrot.slane %v325, 2
    %v327 = vadd.f32 %v325, %v326
    %v328 = vrot.slane %v327, 1
    %v329 = vadd.f32 %v327, %v328
    %s330 = vtos %v329
    %v331 = vstv %s330
    %v332 = vmul.f32 %v331, 0.125
    %v333 = vsel %vm169, %v290, 0.0
    %334 = vadd.xlane.f32.xlu0 %v333
    %v335 = vpop.xlane.xlu0 %334
    %v336 = vrot.slane %v335, 4
    %v337 = vadd.f32 %v335, %v336
    %v338 = vrot.slane %v337, 2
    %v339 = vadd.f32 %v337, %v338
    %v340 = vrot.slane %v339, 1
    %v341 = vadd.f32 %v339, %v340
    %s342 = vtos %v341
    %v343 = vstv %s342
    %v344 = vmul.f32 %v343, 0.125
    %vm345 = vcmp.eq.s32.totalorder %v253, 0
    %v346 = vsel %vm345, %v305, 0.0
    %vm347 = vcmp.eq.s32.totalorder %v253, 1
    %v348 = vsel %vm347, %v320, %v346
    %vm349 = vcmp.eq.s32.totalorder %v253, 2
    %v350 = vsel %vm349, %v332, %v348
    %vm351 = vcmp.eq.s32.totalorder %v253, 3
    %v352 = vsel %vm351, %v344, %v350
    %353 = vst [vmem:[#allocation2] sm:$0x1] %v352
    // Predicated region
    $region10: #{tpu_custom_call.1} parent=1 // pred_check
      _
    $region11: #{tpu_custom_call.1} parent=1 // pred_check_branch
      %355 = sbr.rel (0) target = $region13
    $region12: #{tpu_custom_call.1} parent=1 // pred_region
      %s357 = ssub.s32 16, 16
      %358 = vsyncadd [#allocation3], %s357
      %s360 = sshll.u32 [#allocation2], 4
      %s361 = int_to_ptr.vmem [resolvable:$true] %s360
      %363 = dma.vmem_to_hbm [thread:$0]  %s361, 16, %s2, [#allocation3]
    $region13: #{tpu_custom_call.1} parent=1 // pred_fallthru
      _
    // Predicated region
    $region14: #{tpu_custom_call.1} parent=1 // pred_check
      _
    $region15: #{tpu_custom_call.1} parent=1 // pred_check_branch
      %365 = sbr.rel (0) target = $region17
    $region16: #{tpu_custom_call.1} parent=1 // pred_region
      %366 = dma.done [#allocation3], 16
    $region17: #{tpu_custom_call.1} parent=1 // pred_fallthru
      _
    %367 = vsyncpa [#allocation3], 1

</llo_original>
